<compile_context>
chip_gen: v6e
topology: v6e:2x2x1
jax: 0.10.0
libtpu: 0.0.40
codegen_flags: <defaults>
</compile_context>

<pallas_src>
import jax
import jax.numpy as jnp
from jax.experimental import pallas as pl
from jax.experimental.pallas import tpu as pltpu


def _round_up(x, m):
    return ((x + m - 1) // m) * m


def _cdiv(a, b):
    return (a + b - 1) // b


# ----------------------------------------------------------------------------
# Kernel
# ----------------------------------------------------------------------------
def _critic_kernel(x_ref, w1_ref, b1_ref, w2_ref, b2_ref, w3_ref, b3_ref, q_ref):
    # Layer 1: single fused K=Kp matmul (concat already folded into x / padded
    # W1 in prepare_params).  bf16 operands, f32 accumulation.
    x = x_ref[...].astype(jnp.bfloat16)                       # VPU cast, free filler
    h1 = jnp.dot(x, w1_ref[...], preferred_element_type=jnp.float32) + b1_ref[...]
    h1 = jnp.maximum(h1, 0.0).astype(jnp.bfloat16)            # bf16: MXU input + half VMEM

    # Layer 2 + relu.
    h2 = jnp.dot(h1, w2_ref[...], preferred_element_type=jnp.float32) + b2_ref[...]
    h2 = jnp.maximum(h2, 0.0)                                  # keep f32: feeds the VPU head

    # Q head on VPU/XLU: row-broadcast multiply + lane reduce instead of an
    # N=1 MXU matmul (which would cost as many pushes as layer 2).
    q = jnp.sum(h2 * w3_ref[...], axis=-1, keepdims=True) + b3_ref[...]   # (tb, 1) f32
    q_ref[...] = q.astype(q_ref.dtype)


# ----------------------------------------------------------------------------
# Wrapper
# ----------------------------------------------------------------------------
def prepare_params(params, ds, da):
    """One-time (init-time) packing of the weights into kernel-ready form.

    Returns (w1p, b1, w2, b2, w3row, b3):
      w1p   : (Kp, H) bf16, rows [ds+da:Kp] zero  (Kp = round_up(ds+da, 16))
      b1,b2 : (1, H) f32
      w2    : (H, H) bf16
      w3row : (1, H) f32   (head weights as a row, consumed by the VPU head)
      b3    : (1, 1) f32
    """
    w1, b1, w2, b2, w3, b3 = params
    hidden = w1.shape[1]
    kp = _round_up(ds + da, 16)
    w1p = jnp.pad(w1.astype(jnp.bfloat16), ((0, kp - (ds + da)), (0, 0)))
    return (
        w1p,
        jnp.reshape(b1, (1, hidden)).astype(jnp.float32),
        w2.astype(jnp.bfloat16),
        jnp.reshape(b2, (1, hidden)).astype(jnp.float32),
        jnp.reshape(w3, (1, hidden)).astype(jnp.float32),
        jnp.reshape(b3, (1, 1)).astype(jnp.float32),
    )


def _pick_tile(B, block_b):
    """Rows per grid step (multiple of 8) and padded batch size."""
    Bp = _round_up(max(B, 8), 8)
    if Bp <= block_b:
        if Bp >= 1024:
            # Keep >= 2 grid steps so a 2-TensorCore part (v7x) can shard the
            # "parallel" batch axis.
            tb = _round_up(_cdiv(Bp, 2), 8)
        else:
            tb = Bp                       # whole batch in one step (v5e/v6e sweet spot)
    else:
        tb = block_b
    n_b = _cdiv(Bp, tb)
    return tb, n_b, n_b * tb


def critic_forward(state, action, prep, *, block_b=2048):
    """state: (B, ds) f32, action: (B, da) f32 one-hot  ->  Q: (B, 1) f32.

    `prep` must come from prepare_params() (computed once, not per call).
    """
    w1p, b1, w2, b2, w3r, b3 = prep
    B, ds = state.shape
    da = action.shape[1]
    kp, hidden = w1p.shape
    tb, n_b, Bp = _pick_tile(B, block_b)

    # Single fused layer-1 input slab (Bp, Kp): concat(state, action), zero-
    # padded in K (to Kp) and batch (to Bp).  Kept f32 here; the bf16 cast is
    # done on the VPU inside the kernel (no extra HBM round-trip).
    x = jnp.concatenate([state, action], axis=1)
    x = jnp.pad(x, ((0, Bp - B), (0, kp - (ds + da))))

    cost = pl.CostEstimate(
        flops=2 * Bp * hidden * (kp + hidden + 1),
        transcendentals=0,
        bytes_accessed=(Bp * kp * 4 + Bp * 4
                        + (kp * hidden + hidden * hidden) * 2
                        + (3 * hidden + 1) * 4),
    )

    def resident(a):  # weights/biases: same block every step -> stay VMEM-resident
        return pl.BlockSpec(a.shape, lambda i: (0,) * a.ndim)

    q = pl.pallas_call(
        _critic_kernel,
        out_shape=jax.ShapeDtypeStruct((Bp, 1), jnp.float32),
        grid=(n_b,),
        in_specs=[
            pl.BlockSpec((tb, kp), lambda i: (i, 0)),   # batch tile of fused input
            resident(w1p), resident(b1),
            resident(w2), resident(b2),
            resident(w3r), resident(b3),
        ],
        out_specs=pl.BlockSpec((tb, 1), lambda i: (i, 0)),
        compiler_params=pltpu.CompilerParams(
            dimension_semantics=("parallel",),
            vmem_limit_bytes=64 * 1024 * 1024),
        cost_estimate=cost,
    )(x, w1p, b1, w2, b2, w3r, b3)
    return q[:B]


# ----------------------------------------------------------------------------
# Init + pure-JAX reference
# ----------------------------------------------------------------------------
def init_params(key, ds, da, hidden=256):
    """Deterministic synthetic init (Kaiming-uniform-ish, like nn.Linear default)."""
    ks = jax.random.split(key, 6)

    def lin(kw, kb, fan_in, fan_out):
        bound = 1.0 / jnp.sqrt(fan_in)
        w = jax.random.uniform(kw, (fan_in, fan_out), jnp.float32, -bound, bound)
        b = jax.random.uniform(kb, (fan_out,), jnp.float32, -bound, bound)
        return w, b

    w1, b1 = lin(ks[0], ks[1], ds + da, hidden)
    w2, b2 = lin(ks[2], ks[3], hidden, hidden)
    w3, b3 = lin(ks[4], ks[5], hidden, 1)
    return (w1, b1, w2, b2, w3, b3)


def critic_ref(state, action, params):
    """Pure-JAX reference matching the kernel's bf16-operand / f32-accum math."""
    w1, b1, w2, b2, w3, b3 = params
    bf = lambda t: t.astype(jnp.bfloat16)
    h = jnp.concatenate([state, action], axis=1)
    h = jnp.maximum(jnp.dot(bf(h), bf(w1), preferred_element_type=jnp.float32) + b1, 0.0)
    h = jnp.maximum(jnp.dot(bf(h), bf(w2), preferred_element_type=jnp.float32) + b2, 0.0)
    return jnp.dot(h, w3) + b3            # head in f32, like the in-kernel VPU head


if __name__ == "__main__":
    B, ds, da = 4, 8, 3   # small env-like shapes: obs dim 8, 3 discrete actions

    key = jax.random.PRNGKey(0)
    k_s, k_a, k_p = jax.random.split(key, 3)
    state = jax.random.normal(k_s, (B, ds), jnp.float32)
    # Discrete critic: the action input is a one-hot over the action set.
    action = jax.nn.one_hot(
        jax.random.randint(k_a, (B,), 0, da), da, dtype=jnp.float32)

    params = init_params(k_p, ds, da)
    prep = prepare_params(params, ds, da)   # weight packing done ONCE, off the hot path

    fwd = jax.jit(critic_forward)           # fuses the wrapper concat/pad into one pass
    q = fwd(state, action, prep)
    q = jax.block_until_ready(q)

    q_ref = critic_ref(state, action, params)
    assert q.shape == (B, 1)
    assert jnp.allclose(q, q_ref, atol=1e-3, rtol=1e-3), (q, q_ref)

    print("KERNEL_OK")
</pallas_src>

<mosaic_0001>
module attributes {stable_mosaic.version = 11 : i64} {
  func.func @_critic_kernel(%arg0: i32, %arg1: memref<8x16xf32, #tpu.memory_space<vmem>>, %arg2: memref<16x256xbf16, #tpu.memory_space<vmem>>, %arg3: memref<1x256xf32, #tpu.memory_space<vmem>>, %arg4: memref<256x256xbf16, #tpu.memory_space<vmem>>, %arg5: memref<1x256xf32, #tpu.memory_space<vmem>>, %arg6: memref<1x256xf32, #tpu.memory_space<vmem>>, %arg7: memref<1x1xf32, #tpu.memory_space<vmem>>, %arg8: memref<8x1xf32, #tpu.memory_space<vmem>>) attributes {dimension_semantics = [#tpu.dimension_semantics<parallel>], iteration_bounds = array<i64: 1>, scalar_prefetch = 0 : i64, scratch_operands = 0 : i64, tpu.core_type = #tpu.core_type<tc>, window_params = [{transform_indices = @transform_0, window_bounds = array<i64: 8, 16>}, {pipeline_mode = #tpu.pipeline_mode<synchronous>, transform_indices = @transform_1, window_bounds = array<i64: 16, 256>}, {pipeline_mode = #tpu.pipeline_mode<synchronous>, transform_indices = @transform_2, window_bounds = array<i64: 1, 256>}, {pipeline_mode = #tpu.pipeline_mode<synchronous>, transform_indices = @transform_3, window_bounds = array<i64: 256, 256>}, {pipeline_mode = #tpu.pipeline_mode<synchronous>, transform_indices = @transform_4, window_bounds = array<i64: 1, 256>}, {pipeline_mode = #tpu.pipeline_mode<synchronous>, transform_indices = @transform_5, window_bounds = array<i64: 1, 256>}, {pipeline_mode = #tpu.pipeline_mode<synchronous>, transform_indices = @transform_6, window_bounds = array<i64: 1, 1>}, {transform_indices = @transform_7, window_bounds = array<i64: 8, 1>}]} {
    %c0 = arith.constant 0 : index
    %c0_0 = arith.constant 0 : index
    %0 = vector.load %arg1[%c0, %c0_0] : memref<8x16xf32, #tpu.memory_space<vmem>>, vector<8x16xf32>
    %1 = arith.truncf %0 : vector<8x16xf32> to vector<8x16xbf16>
    %c0_1 = arith.constant 0 : index
    %c0_2 = arith.constant 0 : index
    %2 = vector.load %arg2[%c0_1, %c0_2] : memref<16x256xbf16, #tpu.memory_space<vmem>>, vector<16x256xbf16>
    %cst = arith.constant dense<0.000000e+00> : vector<8x256xf32>
    %3 = tpu.matmul %1, %2, %cst {dimension_numbers = #tpu.dot_dimension_numbers<[1], [0], [0], [1], [0, 0, 1, 1], [], []>} : vector<8x16xbf16>, vector<16x256xbf16>, vector<8x256xf32> -> vector<8x256xf32>
    %c0_3 = arith.constant 0 : index
    %c0_4 = arith.constant 0 : index
    %4 = vector.load %arg3[%c0_3, %c0_4] : memref<1x256xf32, #tpu.memory_space<vmem>>, vector<1x256xf32>
    %5 = vector.broadcast %4 : vector<1x256xf32> to vector<8x256xf32>
    %6 = arith.addf %3, %5 : vector<8x256xf32>
    %cst_5 = arith.constant 0.000000e+00 : f32
    %7 = vector.broadcast %cst_5 : f32 to vector<8x256xf32>
    %8 = arith.maximumf %6, %7 : vector<8x256xf32>
    %9 = arith.truncf %8 : vector<8x256xf32> to vector<8x256xbf16>
    %c0_6 = arith.constant 0 : index
    %c0_7 = arith.constant 0 : index
    %10 = vector.load %arg4[%c0_6, %c0_7] : memref<256x256xbf16, #tpu.memory_space<vmem>>, vector<256x256xbf16>
    %cst_8 = arith.constant dense<0.000000e+00> : vector<8x256xf32>
    %11 = tpu.matmul %9, %10, %cst_8 {dimension_numbers = #tpu.dot_dimension_numbers<[1], [0], [0], [1], [0, 0, 1, 1], [], []>} : vector<8x256xbf16>, vector<256x256xbf16>, vector<8x256xf32> -> vector<8x256xf32>
    %c0_9 = arith.constant 0 : index
    %c0_10 = arith.constant 0 : index
    %12 = vector.load %arg5[%c0_9, %c0_10] : memref<1x256xf32, #tpu.memory_space<vmem>>, vector<1x256xf32>
    %13 = vector.broadcast %12 : vector<1x256xf32> to vector<8x256xf32>
    %14 = arith.addf %11, %13 : vector<8x256xf32>
    %cst_11 = arith.constant 0.000000e+00 : f32
    %15 = vector.broadcast %cst_11 : f32 to vector<8x256xf32>
    %16 = arith.maximumf %14, %15 : vector<8x256xf32>
    %c0_12 = arith.constant 0 : index
    %c0_13 = arith.constant 0 : index
    %17 = vector.load %arg6[%c0_12, %c0_13] : memref<1x256xf32, #tpu.memory_space<vmem>>, vector<1x256xf32>
    %18 = vector.broadcast %17 : vector<1x256xf32> to vector<8x256xf32>
    %19 = arith.mulf %16, %18 : vector<8x256xf32>
    %cst_14 = arith.constant dense<0.000000e+00> : vector<8xf32>
    %20 = vector.multi_reduction <add>, %19, %cst_14 [1] : vector<8x256xf32> to vector<8xf32>
    %21 = vector.shape_cast %20 : vector<8xf32> to vector<8x1xf32>
    %c0_15 = arith.constant 0 : index
    %c0_16 = arith.constant 0 : index
    %22 = vector.load %arg7[%c0_15, %c0_16] : memref<1x1xf32, #tpu.memory_space<vmem>>, vector<1x1xf32>
    %23 = vector.broadcast %22 : vector<1x1xf32> to vector<8x1xf32>
    %24 = arith.addf %21, %23 : vector<8x1xf32>
    %c0_17 = arith.constant 0 : index
    %c0_18 = arith.constant 0 : index
    %25 = vector.load %arg8[%c0_17, %c0_18] : memref<8x1xf32, #tpu.memory_space<vmem>>, vector<8x1xf32>
    tpu.vector_store %arg8[%c0_17, %c0_18], %24 {strides = array<i32>} : memref<8x1xf32, #tpu.memory_space<vmem>>, vector<8x1xf32>,
    return
  }
  func.func @transform_0(%arg0: i32) -> (i32, i32) {
    %c0_i32 = arith.constant 0 : i32
    %c0_i32_0 = arith.constant 0 : i32
    return %arg0, %c0_i32 : i32, i32
  }
  func.func @transform_1(%arg0: i32) -> (i32, i32) {
    %c0_i32 = arith.constant 0 : i32
    %c0_i32_0 = arith.constant 0 : i32
    %c0_i32_1 = arith.constant 0 : i32
    return %c0_i32, %c0_i32_0 : i32, i32
  }
  func.func @transform_2(%arg0: i32) -> (i32, i32) {
    %c0_i32 = arith.constant 0 : i32
    %c0_i32_0 = arith.constant 0 : i32
    %c0_i32_1 = arith.constant 0 : i32
    return %c0_i32, %c0_i32_0 : i32, i32
  }
  func.func @transform_3(%arg0: i32) -> (i32, i32) {
    %c0_i32 = arith.constant 0 : i32
    %c0_i32_0 = arith.constant 0 : i32
    %c0_i32_1 = arith.constant 0 : i32
    return %c0_i32, %c0_i32_0 : i32, i32
  }
  func.func @transform_4(%arg0: i32) -> (i32, i32) {
    %c0_i32 = arith.constant 0 : i32
    %c0_i32_0 = arith.constant 0 : i32
    %c0_i32_1 = arith.constant 0 : i32
    return %c0_i32, %c0_i32_0 : i32, i32
  }
  func.func @transform_5(%arg0: i32) -> (i32, i32) {
    %c0_i32 = arith.constant 0 : i32
    %c0_i32_0 = arith.constant 0 : i32
    %c0_i32_1 = arith.constant 0 : i32
    return %c0_i32, %c0_i32_0 : i32, i32
  }
  func.func @transform_6(%arg0: i32) -> (i32, i32) {
    %c0_i32 = arith.constant 0 : i32
    %c0_i32_0 = arith.constant 0 : i32
    %c0_i32_1 = arith.constant 0 : i32
    return %c0_i32, %c0_i32_0 : i32, i32
  }
  func.func @transform_7(%arg0: i32) -> (i32, i32) {
    %c0_i32 = arith.constant 0 : i32
    %c0_i32_0 = arith.constant 0 : i32
    return %arg0, %c0_i32 : i32, i32
  }
}

</mosaic_0001>

<llo_original>
// kernel: critic_forward.1
$region0: #{critic_forward.1}
  #allocation0 [shape = 'u32[]', space=smem, size = 0x4, offset = 0x4, fixed_abs, tag = 'smem constant byte address 0x4 - core index']
  #allocation1 [shape = 'u32[144,128]{1,0:T(1,128)}', space=vmem, size = 0x12000, scoped, tag = 'internal scratch']
  #allocation2 [shape = 'f32[1,1]{1,0:T(1,128)S(1)}', space=vmem, size = 0x200, scoped, tag = 'scoped memory for critic_forward.1']
  %s0 = inlined_call_operand.vmem [shape: f32[8,16], index: 0, kind: input, shape index: {}]
  %s1 = inlined_call_operand.vmem [shape: bf16[16,256], index: 1, kind: input, shape index: {}]
  %s2 = inlined_call_operand.vmem [shape: f32[1,256], index: 2, kind: input, shape index: {}]
  %s3 = inlined_call_operand.hbm [shape: bf16[256,256], index: 3, kind: input, shape index: {}]
  %s4 = inlined_call_operand.vmem [shape: f32[1,256], index: 4, kind: input, shape index: {}]
  %s5 = inlined_call_operand.vmem [shape: f32[1,256], index: 5, kind: input, shape index: {}]
  %s6 = inlined_call_operand.<no memory space> [shape: f32[1,1], index: 6, kind: input, shape index: {}]
  %s7 = inlined_call_operand.vmem [shape: f32[8,1], index: 7, kind: output, shape index: {}]
  %s8 = sld [smem:[#allocation0]]
  $region42: #{critic_forward.1} parent=0
    _
  %s10 = ssub.s32 1, %s8
  %s11 = scalar_select 0, %s10, %s8
  %v12 = vstv %s6
  %13 = vst [vmem:[#allocation2] sm:$0x1] %v12
  $region1: #{critic_forward.1} parent=0
    #allocation3 [shape = 'u8[131072]{0}', space=vmem, size = 0x20000, scoped, tag = 'input window, operand 3, single buffered']
    #allocation4 [shape = 's32[1]{0}', space=sflag, size = 0x4, scoped, tag = 'scoped memory for critic_forward.1']
    %14 = vsyncpa [#allocation4], 0
    // Predicated region
    $region2: #{critic_forward.1} parent=1 // pred_check
      _
    $region3: #{critic_forward.1} parent=1 // pred_check_branch
      %16 = sbr.rel (0) target = $region5
    $region4: #{critic_forward.1} parent=1 // pred_region
      _
    $region5: #{critic_forward.1} parent=1 // pred_fallthru
      _
    // Predicated region
    $region6: #{critic_forward.1} parent=1 // pred_check
      _
    $region7: #{critic_forward.1} parent=1 // pred_check_branch
      %18 = sbr.rel (0) target = $region9
    $region8: #{critic_forward.1} parent=1 // pred_region
      _
    $region9: #{critic_forward.1} parent=1 // pred_fallthru
      _
    // Predicated region
    $region10: #{critic_forward.1} parent=1 // pred_check
      _
    $region11: #{critic_forward.1} parent=1 // pred_check_branch
      %20 = sbr.rel (0) target = $region13
    $region12: #{critic_forward.1} parent=1 // pred_region
      _
    $region13: #{critic_forward.1} parent=1 // pred_fallthru
      _
    // Predicated region
    $region14: #{critic_forward.1} parent=1 // pred_check
      _
    $region15: #{critic_forward.1} parent=1 // pred_check_branch
      %22 = sbr.rel (0) target = $region17
    $region16: #{critic_forward.1} parent=1 // pred_region
      %s24 = ssub.s32 4096, 4096
      %25 = vsyncadd [#allocation4], %s24
      %s26 = sshll.u32 [#allocation3], 4
      %s27 = int_to_ptr.vmem [resolvable:$true] %s26
      %32 = dma.hbm_to_vmem [thread:$0]  %s3, 4096, %s27, [#allocation4], 128, 128, 8
    $region17: #{critic_forward.1} parent=1 // pred_fallthru
      _
    // Predicated region
    $region18: #{critic_forward.1} parent=1 // pred_check
      _
    $region19: #{critic_forward.1} parent=1 // pred_check_branch
      %34 = sbr.rel (0) target = $region21
    $region20: #{critic_forward.1} parent=1 // pred_region
      _
    $region21: #{critic_forward.1} parent=1 // pred_fallthru
      _
    // Predicated region
    $region22: #{critic_forward.1} parent=1 // pred_check
      _
    $region23: #{critic_forward.1} parent=1 // pred_check_branch
      %36 = sbr.rel (0) target = $region25
    $region24: #{critic_forward.1} parent=1 // pred_region
      _
    $region25: #{critic_forward.1} parent=1 // pred_fallthru
      _
    // Predicated region
    $region26: #{critic_forward.1} parent=1 // pred_check
      _
    $region27: #{critic_forward.1} parent=1 // pred_check_branch
      %38 = sbr.rel (0) target = $region29
    $region28: #{critic_forward.1} parent=1 // pred_region
      _
    $region29: #{critic_forward.1} parent=1 // pred_fallthru
      _
    // Predicated region
    $region30: #{critic_forward.1} parent=1 // pred_check
      _
    $region31: #{critic_forward.1} parent=1 // pred_check_branch
      %40 = sbr.rel (0) target = $region33
    $region32: #{critic_forward.1} parent=1 // pred_region
      %41 = dma.done [#allocation4], 4096
    $region33: #{critic_forward.1} parent=1 // pred_fallthru
      _
    %v43 = vld [vmem:[%s0] sm:$0xff]
    %v44 = vpack.c.bf16 %v43, %v43
    %v45 = vld [vmem:[%s1] sm:$0xff]
    %v46 = vld [vmem:[%s1 + $0x8] sm:$0xff]
    %v47 = vld [vmem:[%s2] sm:$0x3]
    %v49 = vlaneseq
    %v50 = vshrl.u32 %v49, 7
    %v51 = vsub.s32 0, %v50
    %v52 = vrot.slane %v47, %v51
    %v53 = vlaneseq
    %v54 = vshrl.u32 %v53, 7
    %v55 = vsub.s32 1, %v54
    %v56 = vrot.slane %v47, %v55
    %v61 = vunpack.c.l.b16 %v45
    %v62 = vunpack.c.h.b16 %v45
    %v63 = vunpack.c.l.b16 %v46
    %v64 = vunpack.c.h.b16 %v46
    %v65 = vpack.c.b16 %v63, %v61
    %v66 = vpack.c.b16 %v64, %v62
    %vm69 = vcmask 130048
    %v71 = vsel %vm69, %v44, 0
    %73 = vmatprep.subr.bf16.mxu0 0
    %74 = vmatpush1.bf16.msra.mxu0 0
    %75 = vmatprep.subr.bf16.mxu0 0
    %76 = vmatpush1.bf16.msra.mxu0 0
    %77 = vmatprep.subr.bf16.mxu0 0
    %78 = vmatpush1.bf16.msra.mxu0 0
    %79 = vmatprep.subr.bf16.mxu0 0
    %80 = vmatpush1.bf16.msra.mxu0 0
    %81 = vmatprep.subr.bf16.mxu0 0
    %82 = vmatpush1.bf16.msra.mxu0 0
    %83 = vmatprep.subr.bf16.mxu0 0
    %84 = vmatpush1.bf16.msra.mxu0 0
    %85 = vmatprep.subr.bf16.mxu0 0
    %86 = vmatpush1.bf16.msra.mxu0 0
    %87 = vmatprep.subr.bf16.mxu0 %v66
    %88 = vmatpush1.bf16.msra.mxu0 %v65
    %89 = vmatprep.subr.bf16.mxu0 0
    %90 = vmatpush2.bf16.msra.mxu0 0
    %91 = vmatprep.subr.bf16.mxu0 0
    %92 = vmatpush2.bf16.msra.mxu0 0
    %93 = vmatprep.subr.bf16.mxu0 0
    %94 = vmatpush2.bf16.msra.mxu0 0
    %95 = vmatprep.subr.bf16.mxu0 0
    %96 = vmatpush2.bf16.msra.mxu0 0
    %97 = vmatprep.subr.bf16.mxu0 0
    %98 = vmatpush2.bf16.msra.mxu0 0
    %99 = vmatprep.subr.bf16.mxu0 0
    %100 = vmatpush2.bf16.msra.mxu0 0
    %101 = vmatprep.subr.bf16.mxu0 0
    %102 = vmatpush2.bf16.msra.mxu0 0
    %103 = vmatprep.subr.bf16.mxu0 0
    %104 = vmatpush2.bf16.msra.mxu0 0
    %105 = vmatprep.mubr.bf16.mxu0 0
    %106 = vmatmul.mubr.bf16.gmra.mxu0 %v71
    %v107 = vpop.f32.mrf.mxu0
    %v108 = vadd.f32 %v52, %v107
    %v109 = vpop.f32.mrf.mxu0
    %v110 = vadd.f32 %v56, %v109
    %v111 = vpop.f32.mrf.mxu0
    %v112 = vpop.f32.mrf.mxu0
    %113 = vdwg.mxu0
    %v114 = vmax.f32 %v108, 0.0
    %v115 = vmax.f32 %v110, 0.0
    %v116 = vpack.c.bf16 %v114, %v114
    %v117 = vpack.c.bf16 %v115, %v115
    %v118 = vld [vmem:[#allocation3] sm:$0xff]
    %v119 = vld [vmem:[#allocation3 + $0x8] sm:$0xff]
    %v120 = vld [vmem:[#allocation3 + $0x10] sm:$0xff]
    %v121 = vld [vmem:[#allocation3 + $0x18] sm:$0xff]
    %v122 = vld [vmem:[#allocation3 + $0x20] sm:$0xff]
    %v123 = vld [vmem:[#allocation3 + $0x28] sm:$0xff]
    %v124 = vld [vmem:[#allocation3 + $0x30] sm:$0xff]
    %v125 = vld [vmem:[#allocation3 + $0x38] sm:$0xff]
    %v126 = vld [vmem:[#allocation3 + $0x40] sm:$0xff]
    %v127 = vld [vmem:[#allocation3 + $0x48] sm:$0xff]
    %v128 = vld [vmem:[#allocation3 + $0x50] sm:$0xff]
    %v129 = vld [vmem:[#allocation3 + $0x58] sm:$0xff]
    %v130 = vld [vmem:[#allocation3 + $0x60] sm:$0xff]
    %v131 = vld [vmem:[#allocation3 + $0x68] sm:$0xff]
    %v132 = vld [vmem:[#allocation3 + $0x70] sm:$0xff]
    %v133 = vld [vmem:[#allocation3 + $0x78] sm:$0xff]
    %v134 = vld [vmem:[#allocation3 + $0x80] sm:$0xff]
    %v135 = vld [vmem:[#allocation3 + $0x88] sm:$0xff]
    %v136 = vld [vmem:[#allocation3 + $0x90] sm:$0xff]
    %v137 = vld [vmem:[#allocation3 + $0x98] sm:$0xff]
    %v138 = vld [vmem:[#allocation3 + $0xa0] sm:$0xff]
    %v139 = vld [vmem:[#allocation3 + $0xa8] sm:$0xff]
    %v140 = vld [vmem:[#allocation3 + $0xb0] sm:$0xff]
    %v141 = vld [vmem:[#allocation3 + $0xb8] sm:$0xff]
    %v142 = vld [vmem:[#allocation3 + $0xc0] sm:$0xff]
    %v143 = vld [vmem:[#allocation3 + $0xc8] sm:$0xff]
    %v144 = vld [vmem:[#allocation3 + $0xd0] sm:$0xff]
    %v145 = vld [vmem:[#allocation3 + $0xd8] sm:$0xff]
    %v146 = vld [vmem:[#allocation3 + $0xe0] sm:$0xff]
    %v147 = vld [vmem:[#allocation3 + $0xe8] sm:$0xff]
    %v148 = vld [vmem:[#allocation3 + $0xf0] sm:$0xff]
    %v149 = vld [vmem:[#allocation3 + $0xf8] sm:$0xff]
    %v150 = vld [vmem:[%s4] sm:$0x3]
    %v152 = vlaneseq
    %v153 = vshrl.u32 %v152, 7
    %v154 = vsub.s32 0, %v153
    %v155 = vrot.slane %v150, %v154
    %v156 = vlaneseq
    %v157 = vshrl.u32 %v156, 7
    %v158 = vsub.s32 1, %v157
    %v159 = vrot.slane %v150, %v158
    %v194 = vunpack.c.l.b16 %v118
    %v195 = vunpack.c.h.b16 %v118
    %v196 = vunpack.c.l.b16 %v119
    %v197 = vunpack.c.h.b16 %v119
    %v198 = vunpack.c.l.b16 %v120
    %v199 = vunpack.c.h.b16 %v120
    %v200 = vunpack.c.l.b16 %v121
    %v201 = vunpack.c.h.b16 %v121
    %v202 = vunpack.c.l.b16 %v122
    %v203 = vunpack.c.h.b16 %v122
    %v204 = vunpack.c.l.b16 %v123
    %v205 = vunpack.c.h.b16 %v123
    %v206 = vunpack.c.l.b16 %v124
    %v207 = vunpack.c.h.b16 %v124
    %v208 = vunpack.c.l.b16 %v125
    %v209 = vunpack.c.h.b16 %v125
    %v210 = vunpack.c.l.b16 %v126
    %v211 = vunpack.c.h.b16 %v126
    %v212 = vunpack.c.l.b16 %v127
    %v213 = vunpack.c.h.b16 %v127
    %v214 = vunpack.c.l.b16 %v128
    %v215 = vunpack.c.h.b16 %v128
    %v216 = vunpack.c.l.b16 %v129
    %v217 = vunpack.c.h.b16 %v129
    %v218 = vunpack.c.l.b16 %v130
    %v219 = vunpack.c.h.b16 %v130
    %v220 = vunpack.c.l.b16 %v131
    %v221 = vunpack.c.h.b16 %v131
    %v222 = vunpack.c.l.b16 %v132
    %v223 = vunpack.c.h.b16 %v132
    %v224 = vunpack.c.l.b16 %v133
    %v225 = vunpack.c.h.b16 %v133
    %v226 = vunpack.c.l.b16 %v134
    %v227 = vunpack.c.h.b16 %v134
    %v228 = vunpack.c.l.b16 %v135
    %v229 = vunpack.c.h.b16 %v135
    %v230 = vunpack.c.l.b16 %v136
    %v231 = vunpack.c.h.b16 %v136
    %v232 = vunpack.c.l.b16 %v137
    %v233 = vunpack.c.h.b16 %v137
    %v234 = vunpack.c.l.b16 %v138
    %v235 = vunpack.c.h.b16 %v138
    %v236 = vunpack.c.l.b16 %v139
    %v237 = vunpack.c.h.b16 %v139
    %v238 = vunpack.c.l.b16 %v140
    %v239 = vunpack.c.h.b16 %v140
    %v240 = vunpack.c.l.b16 %v141
    %v241 = vunpack.c.h.b16 %v141
    %v242 = vunpack.c.l.b16 %v142
    %v243 = vunpack.c.h.b16 %v142
    %v244 = vunpack.c.l.b16 %v143
    %v245 = vunpack.c.h.b16 %v143
    %v246 = vunpack.c.l.b16 %v144
    %v247 = vunpack.c.h.b16 %v144
    %v248 = vunpack.c.l.b16 %v145
    %v249 = vunpack.c.h.b16 %v145
    %v250 = vunpack.c.l.b16 %v146
    %v251 = vunpack.c.h.b16 %v146
    %v252 = vunpack.c.l.b16 %v147
    %v253 = vunpack.c.h.b16 %v147
    %v254 = vunpack.c.l.b16 %v148
    %v255 = vunpack.c.h.b16 %v148
    %v256 = vunpack.c.l.b16 %v149
    %v257 = vunpack.c.h.b16 %v149
    %v258 = vpack.c.b16 %v196, %v194
    %v259 = vpack.c.b16 %v197, %v195
    %v260 = vpack.c.b16 %v200, %v198
    %v261 = vpack.c.b16 %v201, %v199
    %v262 = vpack.c.b16 %v204, %v202
    %v263 = vpack.c.b16 %v205, %v203
    %v264 = vpack.c.b16 %v208, %v206
    %v265 = vpack.c.b16 %v209, %v207
    %v266 = vpack.c.b16 %v212, %v210
    %v267 = vpack.c.b16 %v213, %v211
    %v268 = vpack.c.b16 %v216, %v214
    %v269 = vpack.c.b16 %v217, %v215
    %v270 = vpack.c.b16 %v220, %v218
    %v271 = vpack.c.b16 %v221, %v219
    %v272 = vpack.c.b16 %v224, %v222
    %v273 = vpack.c.b16 %v225, %v223
    %v274 = vpack.c.b16 %v228, %v226
    %v275 = vpack.c.b16 %v229, %v227
    %v276 = vpack.c.b16 %v232, %v230
    %v277 = vpack.c.b16 %v233, %v231
    %v278 = vpack.c.b16 %v236, %v234
    %v279 = vpack.c.b16 %v237, %v235
    %v280 = vpack.c.b16 %v240, %v238
    %v281 = vpack.c.b16 %v241, %v239
    %v282 = vpack.c.b16 %v244, %v242
    %v283 = vpack.c.b16 %v245, %v243
    %v284 = vpack.c.b16 %v248, %v246
    %v285 = vpack.c.b16 %v249, %v247
    %v286 = vpack.c.b16 %v252, %v250
    %v287 = vpack.c.b16 %v253, %v251
    %v288 = vpack.c.b16 %v256, %v254
    %v289 = vpack.c.b16 %v257, %v255
    %322 = vmatprep.subr.bf16.mxu0 %v273
    %323 = vmatpush1.bf16.msra.mxu0 %v272
    %324 = vmatprep.subr.bf16.mxu0 %v271
    %325 = vmatpush1.bf16.msra.mxu0 %v270
    %326 = vmatprep.subr.bf16.mxu0 %v269
    %327 = vmatpush1.bf16.msra.mxu0 %v268
    %328 = vmatprep.subr.bf16.mxu0 %v267
    %329 = vmatpush1.bf16.msra.mxu0 %v266
    %330 = vmatprep.subr.bf16.mxu0 %v265
    %331 = vmatpush1.bf16.msra.mxu0 %v264
    %332 = vmatprep.subr.bf16.mxu0 %v263
    %333 = vmatpush1.bf16.msra.mxu0 %v262
    %334 = vmatprep.subr.bf16.mxu0 %v261
    %335 = vmatpush1.bf16.msra.mxu0 %v260
    %336 = vmatprep.subr.bf16.mxu0 %v259
    %337 = vmatpush1.bf16.msra.mxu0 %v258
    %338 = vmatprep.subr.bf16.mxu0 %v289
    %339 = vmatpush2.bf16.msra.mxu0 %v288
    %340 = vmatprep.subr.bf16.mxu0 %v287
    %341 = vmatpush2.bf16.msra.mxu0 %v286
    %342 = vmatprep.subr.bf16.mxu0 %v285
    %343 = vmatpush2.bf16.msra.mxu0 %v284
    %344 = vmatprep.subr.bf16.mxu0 %v283
    %345 = vmatpush2.bf16.msra.mxu0 %v282
    %346 = vmatprep.subr.bf16.mxu0 %v281
    %347 = vmatpush2.bf16.msra.mxu0 %v280
    %348 = vmatprep.subr.bf16.mxu0 %v279
    %349 = vmatpush2.bf16.msra.mxu0 %v278
    %350 = vmatprep.subr.bf16.mxu0 %v277
    %351 = vmatpush2.bf16.msra.mxu0 %v276
    %352 = vmatprep.subr.bf16.mxu0 %v275
    %353 = vmatpush2.bf16.msra.mxu0 %v274
    %354 = vmatprep.mubr.bf16.mxu0 %v117
    %355 = vmatmul.mubr.bf16.gmra.mxu0 %v116
    %v356 = vpop.f32.mrf.mxu0
    %v357 = vadd.f32 %v155, %v356
    %v358 = vpop.f32.mrf.mxu0
    %v359 = vadd.f32 %v159, %v358
    %v360 = vpop.f32.mrf.mxu0
    %v361 = vpop.f32.mrf.mxu0
    %362 = vdwg.mxu0
    %v363 = vmax.f32 %v357, 0.0
    %v364 = vmax.f32 %v359, 0.0
    %v365 = vld [vmem:[%s5] sm:$0x3]
    %v367 = vlaneseq
    %v368 = vshrl.u32 %v367, 7
    %v369 = vsub.s32 0, %v368
    %v370 = vrot.slane %v365, %v369
    %v371 = vlaneseq
    %v372 = vshrl.u32 %v371, 7
    %v373 = vsub.s32 1, %v372
    %v374 = vrot.slane %v365, %v373
    %v377 = vmul.f32 %v363, %v370
    %v378 = vmul.f32 %v364, %v374
    %v379 = vadd.f32 %v377, %v378
    %380 = vadd.xlane.f32.xlu0 %v379
    %v381 = vpop.xlane.xlu0 %380
    %v382 = vld [vmem:[#allocation2] sm:$0x1]
    %v384 = vlaneseq
    %v385 = vshrl.u32 %v384, 7
    %v386 = vsub.s32 0, %v385
    %v387 = vrot.slane %v382, %v386
    %v389 = vadd.f32 %v381, %v387
    %vm390 = vcmask 7168
    %391 = vst.msk [vmem:[%s7] sm:$0xff] %vm390, %v389
    // Predicated region
    $region34: #{critic_forward.1} parent=1 // pred_check
      _
    $region35: #{critic_forward.1} parent=1 // pred_check_branch
      %393 = sbr.rel (0) target = $region37
    $region36: #{critic_forward.1} parent=1 // pred_region
      _
    $region37: #{critic_forward.1} parent=1 // pred_fallthru
      _
    // Predicated region
    $region38: #{critic_forward.1} parent=1 // pred_check
      _
    $region39: #{critic_forward.1} parent=1 // pred_check_branch
      %395 = sbr.rel (0) target = $region41
    $region40: #{critic_forward.1} parent=1 // pred_region
      _
    $region41: #{critic_forward.1} parent=1 // pred_fallthru
      _
    %396 = vsyncpa [#allocation4], 1

</llo_original>
